<compile_context>
chip_gen: v5e
topology: v5e:2x2
jax: 0.10.0
libtpu: 0.0.40
codegen_flags: <defaults>
</compile_context>

<pallas_src>
from functools import partial

import jax
import jax.numpy as jnp
from jax.experimental import pallas as pl
from jax.experimental.pallas import tpu as pltpu

_LANE = 128
_SUBLANE = 8


# ----------------------------------------------------------------------------
# Pallas kernel: fused Conv2d(5,1,1) (+ folded BatchNorm2d(1)) + SiLU
# ----------------------------------------------------------------------------
def _silu_weighted_sum(xs, w, b, o_ref, approx_recip):
    # xs: 5 tiles of shape (1, TS, 128); w: 5 scalars; b: scalar.
    f32 = jnp.float32
    z = xs[0].astype(f32) * w[0]
    for k in range(1, 5):
        z = z + xs[k].astype(f32) * w[k]
    z = z + b
    # SiLU = z * sigmoid(z); sigmoid via exp (EUP) + reciprocal (EUP).
    sig = pl.reciprocal(1.0 + jnp.exp(-z), approx=approx_recip)
    o_ref[...] = (z * sig).astype(o_ref.dtype)


def _pb_kernel_const(x0, x1, x2, x3, x4, o_ref, *, w, b, approx_recip):
    # Weights/bias baked as trace-time Python-float constants.
    _silu_weighted_sum([x0[...], x1[...], x2[...], x3[...], x4[...]],
                       w, b, o_ref, approx_recip)


def _pb_kernel_smem(s_ref, x0, x1, x2, x3, x4, o_ref, *, approx_recip):
    # Fallback: scalars delivered through a (6,) SMEM operand.
    w = tuple(s_ref[k] for k in range(5))
    _silu_weighted_sum([x0[...], x1[...], x2[...], x3[...], x4[...]],
                       w, s_ref[5], o_ref, approx_recip)


def _pick_rows_tile(rows, batch, cap_rows=1024, min_steps=4):
    """TS: multiple of 8 dividing `rows`, <= cap_rows; prefer the largest TS
    that still gives >= min_steps total grid steps (megacore / v7x 2 TCs)."""
    cap = min(rows, cap_rows)
    candidates = [ts for ts in range(_SUBLANE, cap + 1, _SUBLANE) if rows % ts == 0]
    assert candidates, f"rows={rows} must be a multiple of {_SUBLANE}"
    good = [ts for ts in candidates if batch * (rows // ts) >= min_steps]
    return max(good) if good else max(candidates)


def process_backbone_scale(frames, fused_scalars, *, cap_rows=1024, min_steps=4):
    """frames: 5 arrays (B, N) = per-frame flattened C*H*W features (same dtype).
    fused_scalars: (6,) f32 = [w0'..w4', b'] with eval-BatchNorm folded in.
    Returns (B, N) = SiLU(conv1x1 over the 5 frames + folded BN) in frames' dtype."""
    assert len(frames) == 5
    B, N = frames[0].shape
    dtype = frames[0].dtype
    approx = jnp.dtype(dtype) == jnp.dtype(jnp.bfloat16)

    # Pad N up to a multiple of 8*128 so the 128-lane rows are sublane-dense:
    # every block is a full (TS,128) tile (bulk DMAs, unmasked stores).
    chunk = _SUBLANE * _LANE
    n_pad = ((N + chunk - 1) // chunk) * chunk
    if n_pad != N:
        frames = [jnp.pad(f, ((0, 0), (0, n_pad - N))) for f in frames]
    rows = n_pad // _LANE
    frames3 = [f.reshape(B, rows, _LANE) for f in frames]   # free contiguous reshape

    ts = _pick_rows_tile(rows, B, cap_rows=cap_rows, min_steps=min_steps)
    grid = (B, rows // ts)
    feat_spec = pl.BlockSpec((1, ts, _LANE), lambda b, n: (b, n, 0))

    # Bake the 6 fused scalars as trace-time constants when concrete (the
    # normal case); otherwise fall back to a (6,) SMEM operand.
    try:
        s = tuple(float(v) for v in
                  jax.device_get(jnp.asarray(fused_scalars, jnp.float32)))
        kernel = partial(_pb_kernel_const, w=s[:5], b=s[5], approx_recip=approx)
        in_specs = [feat_spec] * 5
        operands = tuple(frames3)
    except (TypeError, jax.errors.ConcretizationTypeError,
            jax.errors.TracerArrayConversionError):
        kernel = partial(_pb_kernel_smem, approx_recip=approx)
        in_specs = [pl.BlockSpec(memory_space=pltpu.MemorySpace.SMEM)] + [feat_spec] * 5
        operands = (jnp.asarray(fused_scalars, jnp.float32),) + tuple(frames3)

    # Per-step VMEM: 6 arrays x 2 buffers x (TS*128*bytes) <= 6 MiB at the
    # f32 / TS=1024 worst case -> safe on v7x's 64 MiB VMEM at the 32 MiB cap.
    out = pl.pallas_call(
        kernel,
        out_shape=jax.ShapeDtypeStruct((B, rows, _LANE), dtype),
        grid=grid,
        in_specs=in_specs,
        out_specs=pl.BlockSpec((1, ts, _LANE), lambda b, n: (b, n, 0)),
        compiler_params=pltpu.CompilerParams(
            dimension_semantics=("parallel", "parallel"),
            vmem_limit_bytes=32 * 1024 * 1024,
        ),
    )(*operands)

    out = out.reshape(B, n_pad)
    return out if n_pad == N else out[:, :N]


def fuse_conv_bn(conv_w, conv_b, gamma, beta, rm, rv, eps=1e-5):
    """Fold eval-mode BatchNorm2d(1) into Conv2d(5,1,1) -> (6,) [w'*5, b']."""
    a = gamma * jax.lax.rsqrt(rv + eps)
    w_f = conv_w * a
    b_f = (conv_b - rm) * a + beta
    return jnp.concatenate([w_f, b_f[None]]).astype(jnp.float32)


# ----------------------------------------------------------------------------
# Deterministic stubs for submodules not defined in the provided source
# ----------------------------------------------------------------------------
def synthetic_backbone(x_frame, backbone_params):
    # TODO(synk): YOLOPAFPN is not defined in the provided module; deterministic
    # stub: avg-pool downsample (strides 4/8/16) + fixed 1x1 channel projection.
    B, C_in, H, W = x_frame.shape
    outs = []
    for stride, proj in backbone_params:
        pooled = x_frame.reshape(B, C_in, H // stride, stride, W // stride, stride)
        pooled = pooled.mean(axis=(3, 5))                       # (B, C_in, h, w)
        feat = jnp.einsum("oc,bchw->bohw", proj, pooled)        # 1x1 conv to C_out
        outs.append(feat)
    return tuple(outs)


def synthetic_head(fpn_outs, head_params):
    # TODO(synk): YOLOXHead is not defined in the provided module; eval-mode stub
    # producing detection-shaped output (B, sum_i H_i*W_i, 85).
    preds = []
    for feat, w in zip(fpn_outs, head_params):
        B, C, H, W = feat.shape
        p = jnp.einsum("oc,bchw->bohw", w, feat)                # promotes bf16 -> f32
        preds.append(p.reshape(B, 85, H * W).transpose(0, 2, 1))
    return jnp.concatenate(preds, axis=1)


# ----------------------------------------------------------------------------
# YOLOX module (eval / inference path)
# ----------------------------------------------------------------------------
class YOLOXPallas:
    def __init__(self, key, backbone_channels=(16, 32, 64), strides=(4, 8, 16),
                 feature_dtype=jnp.bfloat16):
        # bf16 feature path halves HBM traffic of the (bandwidth-bound) kernel;
        # the kernel accumulates in f32 either way.
        self.backbone_channels = backbone_channels
        self.strides = strides
        self.feature_dtype = feature_dtype
        keys = jax.random.split(key, 32)
        ki = iter(keys)

        # backbone stub params (deterministic)
        self.backbone_params = []
        for s, c in zip(strides, backbone_channels):
            proj = jax.random.normal(next(ki), (c, 3), jnp.float32) * 0.1
            self.backbone_params.append((s, proj))

        # process_backbone params: Conv2d(5,1,1) + BatchNorm2d(1) per scale,
        # non-trivial eval BN stats, folded into the conv at init time.
        self.pb_conv_w, self.pb_conv_b, self.pb_bn, self.pb_fused = [], [], [], []
        for _ in range(3):
            w = jax.random.normal(next(ki), (5,), jnp.float32) * 0.2
            b = jax.random.normal(next(ki), (), jnp.float32) * 0.05
            gamma = 1.0 + 0.1 * jax.random.normal(next(ki), (), jnp.float32)
            beta = 0.1 * jax.random.normal(next(ki), (), jnp.float32)
            rm = 0.1 * jax.random.normal(next(ki), (), jnp.float32)
            rv = 0.5 + 0.5 * jnp.abs(jax.random.normal(next(ki), (), jnp.float32))
            self.pb_conv_w.append(w)
            self.pb_conv_b.append(b)
            self.pb_bn.append((gamma, beta, rm, rv))
            self.pb_fused.append(fuse_conv_bn(w, b, gamma, beta, rm, rv))

        # head stub params
        self.head_params = [
            jax.random.normal(next(ki), (85, c), jnp.float32) * 0.1
            for c in backbone_channels
        ]

    def __call__(self, x):
        # x: (B, 5, 3, H, W) -- 5 frames, NCHW per frame
        B, T, C, H, W = x.shape
        assert T == 5, "process_backbone expects exactly 5 concatenated frames"
        per_scale_frames = [[] for _ in range(3)]
        for t in range(T):
            rets = synthetic_backbone(x[:, t], self.backbone_params)
            for i, r in enumerate(rets):
                per_scale_frames[i].append(r)

        processed = []
        for i in range(3):
            frames = per_scale_frames[i]
            Bc, C_i, h, w = frames[0].shape
            N = C_i * h * w
            # torch does cat(dim=1).view(B,5,-1,img*img); frame t of that view
            # is exactly frame t flattened -> feed 5 lane/sublane-dense (B, N)
            # arrays (free reshapes); no 5N concat materialized in HBM.
            flat = [f.reshape(Bc, N).astype(self.feature_dtype) for f in frames]
            out = process_backbone_scale(flat, self.pb_fused[i])
            # torch: .view(B, -1, img, img); keep feature dtype (upcast deferred
            # to the consumer).
            processed.append(out.reshape(Bc, C_i, h, w))

        # eval branch: outputs = self.head(fpn_outs)
        # TODO(synk): training branch (head(fpn_outs, targets, x) losses) omitted.
        return synthetic_head(tuple(processed), self.head_params)

    # pure-JAX UNFUSED reference of the Pallas block (verification only):
    # conv1x1 over the 5 frames + eval BatchNorm2d(1) + SiLU, all in f32.
    def _process_backbone_ref(self, frames_flat, i):
        w, b = self.pb_conv_w[i], self.pb_conv_b[i]
        gamma, beta, rm, rv = self.pb_bn[i]
        x = jnp.stack([f.astype(jnp.float32) for f in frames_flat], axis=1)  # (B,5,N)
        z = jnp.einsum("t,btn->bn", w, x) + b
        z = (z - rm) * jax.lax.rsqrt(rv + 1e-5) * gamma + beta
        return z * jax.nn.sigmoid(z)


def _tolerance(dtype):
    if jnp.dtype(dtype) == jnp.dtype(jnp.bfloat16):
        return 2e-2, 2e-2        # bf16 output + approx reciprocal
    return 1e-4, 1e-4            # f32 path, exact reciprocal


if __name__ == "__main__":
    key = jax.random.PRNGKey(0)
    model = YOLOXPallas(key)

    x = jax.random.normal(jax.random.PRNGKey(0), (2, 5, 3, 32, 32), jnp.float32)

    # sanity check: fused Pallas block vs unfused pure-JAX reference,
    # all 3 scales, both the default bf16 path and the f32 path.
    per_scale_frames = [[] for _ in range(3)]
    for t in range(5):
        rets = synthetic_backbone(x[:, t], model.backbone_params)
        for i, r in enumerate(rets):
            per_scale_frames[i].append(r)
    for dt in (jnp.bfloat16, jnp.float32):
        atol, rtol = _tolerance(dt)
        for i in range(3):
            frames = per_scale_frames[i]
            B_, C_i, h, w = frames[0].shape
            N = C_i * h * w
            flat = [f.reshape(B_, N).astype(dt) for f in frames]
            got = process_backbone_scale(flat, model.pb_fused[i]).astype(jnp.float32)
            ref = model._process_backbone_ref(flat, i)
            assert jnp.allclose(got, ref, atol=atol, rtol=rtol), \
                f"mismatch at scale {i} dtype {jnp.dtype(dt)}"

    out = jax.jit(model.__call__)(x)
    jax.block_until_ready(out)
    print("KERNEL_OK")
</pallas_src>

<mosaic_0001>
module attributes {stable_mosaic.version = 11 : i64} {
  func.func @_pb_kernel_const(%arg0: i32, %arg1: i32, %arg2: memref<1x8x128xbf16, #tpu.memory_space<vmem>>, %arg3: memref<1x8x128xbf16, #tpu.memory_space<vmem>>, %arg4: memref<1x8x128xbf16, #tpu.memory_space<vmem>>, %arg5: memref<1x8x128xbf16, #tpu.memory_space<vmem>>, %arg6: memref<1x8x128xbf16, #tpu.memory_space<vmem>>, %arg7: memref<1x8x128xbf16, #tpu.memory_space<vmem>>) attributes {dimension_semantics = [#tpu.dimension_semantics<parallel>, #tpu.dimension_semantics<parallel>], iteration_bounds = array<i64: 2, 1>, scalar_prefetch = 0 : i64, scratch_operands = 0 : i64, tpu.core_type = #tpu.core_type<tc>, window_params = [{transform_indices = @transform_0, window_bounds = array<i64: 1, 8, 128>}, {transform_indices = @transform_1, window_bounds = array<i64: 1, 8, 128>}, {transform_indices = @transform_2, window_bounds = array<i64: 1, 8, 128>}, {transform_indices = @transform_3, window_bounds = array<i64: 1, 8, 128>}, {transform_indices = @transform_4, window_bounds = array<i64: 1, 8, 128>}, {transform_indices = @transform_5, window_bounds = array<i64: 1, 8, 128>}]} {
    %c0 = arith.constant 0 : index
    %c0_0 = arith.constant 0 : index
    %c0_1 = arith.constant 0 : index
    %0 = vector.load %arg2[%c0, %c0_0, %c0_1] : memref<1x8x128xbf16, #tpu.memory_space<vmem>>, vector<1x8x128xbf16>
    %c0_2 = arith.constant 0 : index
    %c0_3 = arith.constant 0 : index
    %c0_4 = arith.constant 0 : index
    %1 = vector.load %arg3[%c0_2, %c0_3, %c0_4] : memref<1x8x128xbf16, #tpu.memory_space<vmem>>, vector<1x8x128xbf16>
    %c0_5 = arith.constant 0 : index
    %c0_6 = arith.constant 0 : index
    %c0_7 = arith.constant 0 : index
    %2 = vector.load %arg4[%c0_5, %c0_6, %c0_7] : memref<1x8x128xbf16, #tpu.memory_space<vmem>>, vector<1x8x128xbf16>
    %c0_8 = arith.constant 0 : index
    %c0_9 = arith.constant 0 : index
    %c0_10 = arith.constant 0 : index
    %3 = vector.load %arg5[%c0_8, %c0_9, %c0_10] : memref<1x8x128xbf16, #tpu.memory_space<vmem>>, vector<1x8x128xbf16>
    %c0_11 = arith.constant 0 : index
    %c0_12 = arith.constant 0 : index
    %c0_13 = arith.constant 0 : index
    %4 = vector.load %arg6[%c0_11, %c0_12, %c0_13] : memref<1x8x128xbf16, #tpu.memory_space<vmem>>, vector<1x8x128xbf16>
    %5 = arith.extf %0 : vector<1x8x128xbf16> to vector<1x8x128xf32>
    %cst = arith.constant -0.145858511 : f32
    %6 = vector.broadcast %cst : f32 to vector<1x8x128xf32>
    %7 = arith.mulf %5, %6 : vector<1x8x128xf32>
    %8 = arith.extf %1 : vector<1x8x128xbf16> to vector<1x8x128xf32>
    %cst_14 = arith.constant 0.146529362 : f32
    %9 = vector.broadcast %cst_14 : f32 to vector<1x8x128xf32>
    %10 = arith.mulf %8, %9 : vector<1x8x128xf32>
    %11 = arith.addf %7, %10 : vector<1x8x128xf32>
    %12 = arith.extf %2 : vector<1x8x128xbf16> to vector<1x8x128xf32>
    %cst_15 = arith.constant 0.394481629 : f32
    %13 = vector.broadcast %cst_15 : f32 to vector<1x8x128xf32>
    %14 = arith.mulf %12, %13 : vector<1x8x128xf32>
    %15 = arith.addf %11, %14 : vector<1x8x128xf32>
    %16 = arith.extf %3 : vector<1x8x128xbf16> to vector<1x8x128xf32>
    %cst_16 = arith.constant -0.189495549 : f32
    %17 = vector.broadcast %cst_16 : f32 to vector<1x8x128xf32>
    %18 = arith.mulf %16, %17 : vector<1x8x128xf32>
    %19 = arith.addf %15, %18 : vector<1x8x128xf32>
    %20 = arith.extf %4 : vector<1x8x128xbf16> to vector<1x8x128xf32>
    %cst_17 = arith.constant -0.554926574 : f32
    %21 = vector.broadcast %cst_17 : f32 to vector<1x8x128xf32>
    %22 = arith.mulf %20, %21 : vector<1x8x128xf32>
    %23 = arith.addf %19, %22 : vector<1x8x128xf32>
    %cst_18 = arith.constant 0.0638346821 : f32
    %24 = vector.broadcast %cst_18 : f32 to vector<1x8x128xf32>
    %25 = arith.addf %23, %24 : vector<1x8x128xf32>
    %cst_19 = arith.constant 0.000000e+00 : f32
    %26 = vector.broadcast %cst_19 : f32 to vector<1x8x128xf32>
    %27 = arith.subf %26, %25 : vector<1x8x128xf32>
    %28 = math.exp %27 : vector<1x8x128xf32>
    %cst_20 = arith.constant 1.000000e+00 : f32
    %29 = vector.broadcast %cst_20 : f32 to vector<1x8x128xf32>
    %30 = arith.addf %29, %28 : vector<1x8x128xf32>
    %31 = tpu.reciprocal %30 {approx = true} : vector<1x8x128xf32> -> vector<1x8x128xf32>
    %32 = arith.mulf %25, %31 : vector<1x8x128xf32>
    %33 = arith.truncf %32 : vector<1x8x128xf32> to vector<1x8x128xbf16>
    %c0_21 = arith.constant 0 : index
    %c0_22 = arith.constant 0 : index
    %c0_23 = arith.constant 0 : index
    %34 = vector.load %arg7[%c0_21, %c0_22, %c0_23] : memref<1x8x128xbf16, #tpu.memory_space<vmem>>, vector<1x8x128xbf16>
    tpu.vector_store %arg7[%c0_21, %c0_22, %c0_23], %33 {strides = array<i32>} : memref<1x8x128xbf16, #tpu.memory_space<vmem>>, vector<1x8x128xbf16>,
    return
  }
  func.func @transform_0(%arg0: i32, %arg1: i32) -> (i32, i32, i32) {
    %c0_i32 = arith.constant 0 : i32
    %c0_i32_0 = arith.constant 0 : i32
    return %arg0, %arg1, %c0_i32 : i32, i32, i32
  }
  func.func @transform_1(%arg0: i32, %arg1: i32) -> (i32, i32, i32) {
    %c0_i32 = arith.constant 0 : i32
    %c0_i32_0 = arith.constant 0 : i32
    return %arg0, %arg1, %c0_i32 : i32, i32, i32
  }
  func.func @transform_2(%arg0: i32, %arg1: i32) -> (i32, i32, i32) {
    %c0_i32 = arith.constant 0 : i32
    %c0_i32_0 = arith.constant 0 : i32
    return %arg0, %arg1, %c0_i32 : i32, i32, i32
  }
  func.func @transform_3(%arg0: i32, %arg1: i32) -> (i32, i32, i32) {
    %c0_i32 = arith.constant 0 : i32
    %c0_i32_0 = arith.constant 0 : i32
    return %arg0, %arg1, %c0_i32 : i32, i32, i32
  }
  func.func @transform_4(%arg0: i32, %arg1: i32) -> (i32, i32, i32) {
    %c0_i32 = arith.constant 0 : i32
    %c0_i32_0 = arith.constant 0 : i32
    return %arg0, %arg1, %c0_i32 : i32, i32, i32
  }
  func.func @transform_5(%arg0: i32, %arg1: i32) -> (i32, i32, i32) {
    %c0_i32 = arith.constant 0 : i32
    %c0_i32_0 = arith.constant 0 : i32
    return %arg0, %arg1, %c0_i32 : i32, i32, i32
  }
}

</mosaic_0001>

<llo_original>
// kernel: tpu_custom_call.1
$region0: #{tpu_custom_call.1}
  #allocation0 [shape = 'u32[]', space=smem, size = 0x4, offset = 0x4, fixed_abs, tag = 'smem constant byte address 0x4 - core index']
  #allocation1 [shape = 'u32[72,128]{1,0:T(1,128)}', space=vmem, size = 0x9000, scoped, tag = 'internal scratch']
  %s0 = inlined_call_operand.hbm [shape: bf16[2,8,128], index: 0, kind: input, shape index: {}]
  %s1 = inlined_call_operand.hbm [shape: bf16[2,8,128], index: 1, kind: input, shape index: {}]
  %s2 = inlined_call_operand.hbm [shape: bf16[2,8,128], index: 2, kind: input, shape index: {}]
  %s3 = inlined_call_operand.hbm [shape: bf16[2,8,128], index: 3, kind: input, shape index: {}]
  %s4 = inlined_call_operand.hbm [shape: bf16[2,8,128], index: 4, kind: input, shape index: {}]
  %s5 = inlined_call_operand.hbm [shape: bf16[2,8,128], index: 5, kind: output, shape index: {}]
  %s6 = sld [smem:[#allocation0]]
  $region73: #{tpu_custom_call.1} parent=0
    _
  %s8 = ssub.s32 1, %s6
  %s9 = scalar_select 0, %s8, %s6
  $region1: #{tpu_custom_call.1} parent=0
    #allocation2 [shape = 'u8[4096]{0}', space=vmem, size = 0x1000, scoped, tag = 'input window, operand 0']
    #allocation3 [shape = 's32[2]{0}', space=sflag, size = 0x8, scoped, tag = 'scoped memory for tpu_custom_call.1']
    #allocation4 [shape = 's32[2]{0}', space=sflag, size = 0x8, scoped, tag = 'scoped memory for tpu_custom_call.1']
    #allocation5 [shape = 'u8[4096]{0}', space=vmem, size = 0x1000, scoped, tag = 'input window, operand 1']
    #allocation6 [shape = 's32[2]{0}', space=sflag, size = 0x8, scoped, tag = 'scoped memory for tpu_custom_call.1']
    #allocation7 [shape = 'u8[4096]{0}', space=vmem, size = 0x1000, scoped, tag = 'input window, operand 2']
    #allocation8 [shape = 'u8[4096]{0}', space=vmem, size = 0x1000, scoped, tag = 'input window, operand 3']
    #allocation9 [shape = 's32[2]{0}', space=sflag, size = 0x8, scoped, tag = 'scoped memory for tpu_custom_call.1']
    #allocation10 [shape = 'u8[4096]{0}', space=vmem, size = 0x1000, scoped, tag = 'input window, operand 4']
    #allocation11 [shape = 'u8[4096]{0}', space=vmem, size = 0x1000, scoped, tag = 'output window, operand 0']
    %10 = vsyncpa [#allocation3], 0
    %s11 = scalar_lea.sflag [#allocation3], 1
    %12 = vsyncpa %s11, 0
    %13 = vsyncpa [#allocation6], 0
    %s14 = scalar_lea.sflag [#allocation6], 1
    %15 = vsyncpa %s14, 0
    %16 = vsyncpa [#allocation9], 0
    %s17 = scalar_lea.sflag [#allocation9], 1
    %18 = vsyncpa %s17, 0
    %19 = vsyncpa [#allocation4], 0
    %s20 = scalar_lea.sflag [#allocation4], 1
    %21 = vsyncpa %s20, 0
    loop: start=0, step=1, limit=4
    $region2: #{tpu_custom_call.1} parent=1 // loop_pre_header
      _
    $region3: #{tpu_custom_call.1} parent=1 // loop_header
      %s23 = sphi 0, %s27
      %p24 = scmp.ge.s32.totalorder %s23, 4
      %s30 = sphi 0, %s42
      %s31 = sphi 0, %s38
      %s32 = sphi 0, %s30
      %s33 = sphi 0, %s31
      %s34 = sphi 0, %s32
      %s35 = sphi 0, %s33
      %s47 = sphi 0, %s49
      %s50 = sphi 0, %s47
      %s51 = sphi 0, %s50
      %s67 = sphi 0, %s51
      %s75 = sphi 0, %s77
      %s78 = sphi 0, %s75
      %s79 = sphi 0, %s78
      %s95 = sphi 0, %s79
      %s103 = sphi 0, %s105
      %s106 = sphi 0, %s103
      %s107 = sphi 0, %s106
      %s123 = sphi 0, %s107
      %s131 = sphi 0, %s133
      %s134 = sphi 0, %s131
      %s135 = sphi 0, %s134
      %s151 = sphi 0, %s135
      %s159 = sphi 0, %s161
      %s162 = sphi 0, %s159
      %s163 = sphi 0, %s162
      %s179 = sphi 0, %s163
      %s187 = sphi 0, %s189
      %s190 = sphi 0, %s187
      %s191 = sphi 0, %s190
      %s207 = sphi 0, %s191
    $region4: #{tpu_custom_call.1} parent=1 // loop_header_branch
      %26 = sbr.rel (%p24) target = $region8
    $region5: #{tpu_custom_call.1} parent=1 // loop_body
      %s28 = ssub.s32 %s23, 1
      %s29 = ssub.s32 %s23, 2
      %s36 = sadd.s32 1, %s31
      %p37 = scmp.ge.s32.totalorder %s36, 1
      %s38 = scalar_select %p37, 0, %s36
      %s39 = sadd.s32 1, %s30
      %s40 = scalar_select %p37, %s39, %s30
      %p41 = scmp.ge.s32.totalorder %s40, 2
      %s42 = scalar_select %p41, 0, %s40
      %s43 = ssub.s32 %s30, %s42
      %s44 = ssub.s32 %s31, %s38
      %s45 = sor.u32 %s43, %s44
      %p46 = scmp.eq.s32.totalorder %s45, 0
      %s48 = sadd.s32 %s47, 1
      %s49 = scalar_select %p46, %s47, %s48
      %p52 = pneg %p46
      %p53 = scmp.eq.s32.totalorder %s23, 1
      %p54 = por %p52, %p53
      %p55 = scmp.ne.s32.totalorder %s47, %s50
      %p56 = scmp.eq.s32.totalorder %s23, 0
      %p57 = por %p55, %p56
      %p58 = scmp.ne.s32.totalorder %s47, %s50
      %p59 = scmp.eq.s32.totalorder %s28, 1
      %p60 = por %p58, %p59
      %p61 = scmp.ne.s32.totalorder %s50, %s51
      %p62 = scmp.eq.s32.totalorder %s28, 0
      %p63 = por %p61, %p62
      %p64 = scmp.ne.s32.totalorder %s50, %s51
      %p65 = scmp.eq.s32.totalorder %s29, 1
      %p66 = por %p64, %p65
      %p68 = scmp.ne.s32.totalorder %s51, %s67
      %p69 = scmp.eq.s32.totalorder %s29, 0
      %p70 = por %p68, %p69
      %s71 = ssub.s32 %s30, %s42
      %s72 = ssub.s32 %s31, %s38
      %s73 = sor.u32 %s71, %s72
      %p74 = scmp.eq.s32.totalorder %s73, 0
      %s76 = sadd.s32 %s75, 1
      %s77 = scalar_select %p74, %s75, %s76
      %p80 = pneg %p74
      %p81 = scmp.eq.s32.totalorder %s23, 1
      %p82 = por %p80, %p81
      %p83 = scmp.ne.s32.totalorder %s75, %s78
      %p84 = scmp.eq.s32.totalorder %s23, 0
      %p85 = por %p83, %p84
      %p86 = scmp.ne.s32.totalorder %s75, %s78
      %p87 = scmp.eq.s32.totalorder %s28, 1
      %p88 = por %p86, %p87
      %p89 = scmp.ne.s32.totalorder %s78, %s79
      %p90 = scmp.eq.s32.totalorder %s28, 0
      %p91 = por %p89, %p90
      %p92 = scmp.ne.s32.totalorder %s78, %s79
      %p93 = scmp.eq.s32.totalorder %s29, 1
      %p94 = por %p92, %p93
      %p96 = scmp.ne.s32.totalorder %s79, %s95
      %p97 = scmp.eq.s32.totalorder %s29, 0
      %p98 = por %p96, %p97
      %s99 = ssub.s32 %s30, %s42
      %s100 = ssub.s32 %s31, %s38
      %s101 = sor.u32 %s99, %s100
      %p102 = scmp.eq.s32.totalorder %s101, 0
      %s104 = sadd.s32 %s103, 1
      %s105 = scalar_select %p102, %s103, %s104
      %p108 = pneg %p102
      %p109 = scmp.eq.s32.totalorder %s23, 1
      %p110 = por %p108, %p109
      %p111 = scmp.ne.s32.totalorder %s103, %s106
      %p112 = scmp.eq.s32.totalorder %s23, 0
      %p113 = por %p111, %p112
      %p114 = scmp.ne.s32.totalorder %s103, %s106
      %p115 = scmp.eq.s32.totalorder %s28, 1
      %p116 = por %p114, %p115
      %p117 = scmp.ne.s32.totalorder %s106, %s107
      %p118 = scmp.eq.s32.totalorder %s28, 0
      %p119 = por %p117, %p118
      %p120 = scmp.ne.s32.totalorder %s106, %s107
      %p121 = scmp.eq.s32.totalorder %s29, 1
      %p122 = por %p120, %p121
      %p124 = scmp.ne.s32.totalorder %s107, %s123
      %p125 = scmp.eq.s32.totalorder %s29, 0
      %p126 = por %p124, %p125
      %s127 = ssub.s32 %s30, %s42
      %s128 = ssub.s32 %s31, %s38
      %s129 = sor.u32 %s127, %s128
      %p130 = scmp.eq.s32.totalorder %s129, 0
      %s132 = sadd.s32 %s131, 1
      %s133 = scalar_select %p130, %s131, %s132
      %p136 = pneg %p130
      %p137 = scmp.eq.s32.totalorder %s23, 1
      %p138 = por %p136, %p137
      %p139 = scmp.ne.s32.totalorder %s131, %s134
      %p140 = scmp.eq.s32.totalorder %s23, 0
      %p141 = por %p139, %p140
      %p142 = scmp.ne.s32.totalorder %s131, %s134
      %p143 = scmp.eq.s32.totalorder %s28, 1
      %p144 = por %p142, %p143
      %p145 = scmp.ne.s32.totalorder %s134, %s135
      %p146 = scmp.eq.s32.totalorder %s28, 0
      %p147 = por %p145, %p146
      %p148 = scmp.ne.s32.totalorder %s134, %s135
      %p149 = scmp.eq.s32.totalorder %s29, 1
      %p150 = por %p148, %p149
      %p152 = scmp.ne.s32.totalorder %s135, %s151
      %p153 = scmp.eq.s32.totalorder %s29, 0
      %p154 = por %p152, %p153
      %s155 = ssub.s32 %s30, %s42
      %s156 = ssub.s32 %s31, %s38
      %s157 = sor.u32 %s155, %s156
      %p158 = scmp.eq.s32.totalorder %s157, 0
      %s160 = sadd.s32 %s159, 1
      %s161 = scalar_select %p158, %s159, %s160
      %p164 = pneg %p158
      %p165 = scmp.eq.s32.totalorder %s23, 1
      %p166 = por %p164, %p165
      %p167 = scmp.ne.s32.totalorder %s159, %s162
      %p168 = scmp.eq.s32.totalorder %s23, 0
      %p169 = por %p167, %p168
      %p170 = scmp.ne.s32.totalorder %s159, %s162
      %p171 = scmp.eq.s32.totalorder %s28, 1
      %p172 = por %p170, %p171
      %p173 = scmp.ne.s32.totalorder %s162, %s163
      %p174 = scmp.eq.s32.totalorder %s28, 0
      %p175 = por %p173, %p174
      %p176 = scmp.ne.s32.totalorder %s162, %s163
      %p177 = scmp.eq.s32.totalorder %s29, 1
      %p178 = por %p176, %p177
      %p180 = scmp.ne.s32.totalorder %s163, %s179
      %p181 = scmp.eq.s32.totalorder %s29, 0
      %p182 = por %p180, %p181
      %s183 = ssub.s32 %s30, %s42
      %s184 = ssub.s32 %s31, %s38
      %s185 = sor.u32 %s183, %s184
      %p186 = scmp.eq.s32.totalorder %s185, 0
      %s188 = sadd.s32 %s187, 1
      %s189 = scalar_select %p186, %s187, %s188
      %p192 = pneg %p186
      %p193 = scmp.eq.s32.totalorder %s23, 1
      %p194 = por %p192, %p193
      %p195 = scmp.ne.s32.totalorder %s187, %s190
      %p196 = scmp.eq.s32.totalorder %s23, 0
      %p197 = por %p195, %p196
      %p198 = scmp.ne.s32.totalorder %s187, %s190
      %p199 = scmp.eq.s32.totalorder %s28, 1
      %p200 = por %p198, %p199
      %p201 = scmp.ne.s32.totalorder %s190, %s191
      %p202 = scmp.eq.s32.totalorder %s28, 0
      %p203 = por %p201, %p202
      %p204 = scmp.ne.s32.totalorder %s190, %s191
      %p205 = scmp.eq.s32.totalorder %s29, 1
      %p206 = por %p204, %p205
      %p208 = scmp.ne.s32.totalorder %s191, %s207
      %p209 = scmp.eq.s32.totalorder %s29, 0
      %p210 = por %p208, %p209
      %p211 = scmp.le.s32.totalorder 1, %s23
      %p212 = scmp.lt.s32.totalorder %s23, 3
      %p213 = pnand %p211, %p212
      %p214 = pneg %p213
      // Predicated region
      $region9: #{tpu_custom_call.1} parent=5 // pred_check
        _
      $region10: #{tpu_custom_call.1} parent=5 // pred_check_branch
        %216 = sbr.rel (%p213) target = $region12
      $region11: #{tpu_custom_call.1} parent=5 // pred_region
        %s217 = ssub.s32 %s23, 1
      $region12: #{tpu_custom_call.1} parent=5 // pred_fallthru
        _
      %p218 = scmp.lt.s32.totalorder %s23, 2
      // Predicated region
      $region13: #{tpu_custom_call.1} parent=5 // pred_check
        %p219 = pneg %p218
      $region14: #{tpu_custom_call.1} parent=5 // pred_check_branch
        %221 = sbr.rel (%p219) target = $region16
      $region15: #{tpu_custom_call.1} parent=5 // pred_region
        // Predicated region
        $region17: #{tpu_custom_call.1} parent=15 // pred_check
          %p222 = pneg %p57
        $region18: #{tpu_custom_call.1} parent=15 // pred_check_branch
          %224 = sbr.rel (%p222) target = $region20
        $region19: #{tpu_custom_call.1} parent=15 // pred_region
          %s225 = sand.u32 %s47, 1
          %s226 = scalar_lea.sflag [#allocation3], %s225
          %s227 = sand.u32 %s47, 1
          %s228 = smul.addr %s227, 4
          %s229 = scalar_lea.vmem [#allocation2], %s228
          %231 = vsyncadd %s226, 0
          %s232 = sadd.s32 %s31, %s30
          %s233 = smul.addr %s232, 4
          %s234 = scalar_lea.hbm %s0, %s233
          %s236 = sshll.u32 %s234, 4
          %s237 = int_to_ptr.hbm [resolvable:$true] %s236
          %s238 = sshll.u32 %s229, 4
          %s239 = int_to_ptr.vmem [resolvable:$true] %s238
          %241 = dma.hbm_to_vmem [thread:$0]  %s237, 64, %s239, %s226
        $region20: #{tpu_custom_call.1} parent=15 // pred_fallthru
          _
        // Predicated region
        $region21: #{tpu_custom_call.1} parent=15 // pred_check
          %p242 = pneg %p85
        $region22: #{tpu_custom_call.1} parent=15 // pred_check_branch
          %244 = sbr.rel (%p242) target = $region24
        $region23: #{tpu_custom_call.1} parent=15 // pred_region
          %s245 = sand.u32 %s23, 1
          %s246 = scalar_lea.sflag [#allocation6], %s245
          %s247 = sand.u32 %s75, 1
          %s248 = smul.addr %s247, 4
          %s249 = scalar_lea.vmem [#allocation5], %s248
          %251 = vsyncadd %s246, 0
          %s252 = sadd.s32 %s31, %s30
          %s253 = smul.addr %s252, 4
          %s254 = scalar_lea.hbm %s1, %s253
          %s256 = sshll.u32 %s254, 4
          %s257 = int_to_ptr.hbm [resolvable:$true] %s256
          %s258 = sshll.u32 %s249, 4
          %s259 = int_to_ptr.vmem [resolvable:$true] %s258
          %261 = dma.hbm_to_vmem [thread:$0]  %s257, 64, %s259, %s246
        $region24: #{tpu_custom_call.1} parent=15 // pred_fallthru
          _
        // Predicated region
        $region25: #{tpu_custom_call.1} parent=15 // pred_check
          %p262 = pneg %p113
        $region26: #{tpu_custom_call.1} parent=15 // pred_check_branch
          %264 = sbr.rel (%p262) target = $region28
        $region27: #{tpu_custom_call.1} parent=15 // pred_region
          %s265 = sand.u32 %s23, 1
          %s266 = scalar_lea.sflag [#allocation6], %s265
          %s267 = sand.u32 %s103, 1
          %s268 = smul.addr %s267, 4
          %s269 = scalar_lea.vmem [#allocation7], %s268
          %271 = vsyncadd %s266, 0
          %s272 = sadd.s32 %s31, %s30
          %s273 = smul.addr %s272, 4
          %s274 = scalar_lea.hbm %s2, %s273
          %s276 = sshll.u32 %s274, 4
          %s277 = int_to_ptr.hbm [resolvable:$true] %s276
          %s278 = sshll.u32 %s269, 4
          %s279 = int_to_ptr.vmem [resolvable:$true] %s278
          %281 = dma.hbm_to_vmem [thread:$0]  %s277, 64, %s279, %s266
        $region28: #{tpu_custom_call.1} parent=15 // pred_fallthru
          _
        // Predicated region
        $region29: #{tpu_custom_call.1} parent=15 // pred_check
          %p282 = pneg %p141
        $region30: #{tpu_custom_call.1} parent=15 // pred_check_branch
          %284 = sbr.rel (%p282) target = $region32
        $region31: #{tpu_custom_call.1} parent=15 // pred_region
          %s285 = sand.u32 %s23, 1
          %s286 = scalar_lea.sflag [#allocation9], %s285
          %s287 = sand.u32 %s131, 1
          %s288 = smul.addr %s287, 4
          %s289 = scalar_lea.vmem [#allocation8], %s288
          %291 = vsyncadd %s286, 0
          %s292 = sadd.s32 %s31, %s30
          %s293 = smul.addr %s292, 4
          %s294 = scalar_lea.hbm %s3, %s293
          %s296 = sshll.u32 %s294, 4
          %s297 = int_to_ptr.hbm [resolvable:$true] %s296
          %s298 = sshll.u32 %s289, 4
          %s299 = int_to_ptr.vmem [resolvable:$true] %s298
          %301 = dma.hbm_to_vmem [thread:$0]  %s297, 64, %s299, %s286
        $region32: #{tpu_custom_call.1} parent=15 // pred_fallthru
          _
        // Predicated region
        $region33: #{tpu_custom_call.1} parent=15 // pred_check
          %p302 = pneg %p169
        $region34: #{tpu_custom_call.1} parent=15 // pred_check_branch
          %304 = sbr.rel (%p302) target = $region36
        $region35: #{tpu_custom_call.1} parent=15 // pred_region
          %s305 = sand.u32 %s23, 1
          %s306 = scalar_lea.sflag [#allocation9], %s305
          %s307 = sand.u32 %s159, 1
          %s308 = smul.addr %s307, 4
          %s309 = scalar_lea.vmem [#allocation10], %s308
          %311 = vsyncadd %s306, 0
          %s312 = sadd.s32 %s31, %s30
          %s313 = smul.addr %s312, 4
          %s314 = scalar_lea.hbm %s4, %s313
          %s316 = sshll.u32 %s314, 4
          %s317 = int_to_ptr.hbm [resolvable:$true] %s316
          %s318 = sshll.u32 %s309, 4
          %s319 = int_to_ptr.vmem [resolvable:$true] %s318
          %321 = dma.hbm_to_vmem [thread:$0]  %s317, 64, %s319, %s306
        $region36: #{tpu_custom_call.1} parent=15 // pred_fallthru
          _
      $region16: #{tpu_custom_call.1} parent=5 // pred_fallthru
        _
      %p322 = scmp.le.s32.totalorder 1, %s23
      %p323 = scmp.lt.s32.totalorder %s23, 3
      %p324 = pnand %p322, %p323
      %p325 = pneg %p324
      // Predicated region
      $region37: #{tpu_custom_call.1} parent=5 // pred_check
        _
      $region38: #{tpu_custom_call.1} parent=5 // pred_check_branch
        %327 = sbr.rel (%p324) target = $region40
      $region39: #{tpu_custom_call.1} parent=5 // pred_region
        %s328 = ssub.s32 %s23, 1
        %s329 = sand.u32 %s50, 1
        %s330 = scalar_lea.sflag [#allocation3], %s329
        %s331 = sand.u32 %s50, 1
        %s332 = smul.addr %s331, 4
        %s333 = scalar_lea.vmem [#allocation2], %s332
        // Predicated region
        $region41: #{tpu_custom_call.1} parent=39 // pred_check
          %p334 = pneg %p63
        $region42: #{tpu_custom_call.1} parent=39 // pred_check_branch
          %336 = sbr.rel (%p334) target = $region44
        $region43: #{tpu_custom_call.1} parent=39 // pred_region
          %338 = dma.done %s330, 64
        $region44: #{tpu_custom_call.1} parent=39 // pred_fallthru
          _
        %s339 = sand.u32 %s28, 1
        %s340 = scalar_lea.sflag [#allocation6], %s339
        %s341 = sand.u32 %s78, 1
        %s342 = smul.addr %s341, 4
        %s343 = scalar_lea.vmem [#allocation5], %s342
        // Predicated region
        $region45: #{tpu_custom_call.1} parent=39 // pred_check
          %p344 = pneg %p91
        $region46: #{tpu_custom_call.1} parent=39 // pred_check_branch
          %346 = sbr.rel (%p344) target = $region48
        $region47: #{tpu_custom_call.1} parent=39 // pred_region
          %348 = dma.done %s340, 64
        $region48: #{tpu_custom_call.1} parent=39 // pred_fallthru
          _
        %s349 = sand.u32 %s28, 1
        %s350 = scalar_lea.sflag [#allocation6], %s349
        %s351 = sand.u32 %s106, 1
        %s352 = smul.addr %s351, 4
        %s353 = scalar_lea.vmem [#allocation7], %s352
        // Predicated region
        $region49: #{tpu_custom_call.1} parent=39 // pred_check
          %p354 = pneg %p119
        $region50: #{tpu_custom_call.1} parent=39 // pred_check_branch
          %356 = sbr.rel (%p354) target = $region52
        $region51: #{tpu_custom_call.1} parent=39 // pred_region
          %358 = dma.done %s350, 64
        $region52: #{tpu_custom_call.1} parent=39 // pred_fallthru
          _
        %s359 = sand.u32 %s28, 1
        %s360 = scalar_lea.sflag [#allocation9], %s359
        %s361 = sand.u32 %s134, 1
        %s362 = smul.addr %s361, 4
        %s363 = scalar_lea.vmem [#allocation8], %s362
        // Predicated region
        $region53: #{tpu_custom_call.1} parent=39 // pred_check
          %p364 = pneg %p147
        $region54: #{tpu_custom_call.1} parent=39 // pred_check_branch
          %366 = sbr.rel (%p364) target = $region56
        $region55: #{tpu_custom_call.1} parent=39 // pred_region
          %368 = dma.done %s360, 64
        $region56: #{tpu_custom_call.1} parent=39 // pred_fallthru
          _
        %s369 = sand.u32 %s28, 1
        %s370 = scalar_lea.sflag [#allocation9], %s369
        %s371 = sand.u32 %s162, 1
        %s372 = smul.addr %s371, 4
        %s373 = scalar_lea.vmem [#allocation10], %s372
        // Predicated region
        $region57: #{tpu_custom_call.1} parent=39 // pred_check
          %p374 = pneg %p175
        $region58: #{tpu_custom_call.1} parent=39 // pred_check_branch
          %376 = sbr.rel (%p374) target = $region60
        $region59: #{tpu_custom_call.1} parent=39 // pred_region
          %378 = dma.done %s370, 64
        $region60: #{tpu_custom_call.1} parent=39 // pred_fallthru
          _
        %s379 = sand.u32 %s50, 1
        %s380 = scalar_lea.sflag [#allocation3], %s379
        %s381 = sand.u32 %s50, 1
        %s382 = smul.addr %s381, 4
        %s383 = scalar_lea.vmem [#allocation2], %s382
        %p384 = pneg %p63
        %p385 = pneg %p60
        %s386 = sand.u32 %s28, 1
        %s387 = scalar_lea.sflag [#allocation6], %s386
        %s388 = sand.u32 %s78, 1
        %s389 = smul.addr %s388, 4
        %s390 = scalar_lea.vmem [#allocation5], %s389
        %p391 = pneg %p91
        %p392 = pneg %p88
        %s393 = sand.u32 %s28, 1
        %s394 = scalar_lea.sflag [#allocation6], %s393
        %s395 = sand.u32 %s106, 1
        %s396 = smul.addr %s395, 4
        %s397 = scalar_lea.vmem [#allocation7], %s396
        %p398 = pneg %p119
        %p399 = pneg %p116
        %s400 = sand.u32 %s28, 1
        %s401 = scalar_lea.sflag [#allocation9], %s400
        %s402 = sand.u32 %s134, 1
        %s403 = smul.addr %s402, 4
        %s404 = scalar_lea.vmem [#allocation8], %s403
        %p405 = pneg %p147
        %p406 = pneg %p144
        %s407 = sand.u32 %s28, 1
        %s408 = scalar_lea.sflag [#allocation9], %s407
        %s409 = sand.u32 %s162, 1
        %s410 = smul.addr %s409, 4
        %s411 = scalar_lea.vmem [#allocation10], %s410
        %p412 = pneg %p175
        %p413 = pneg %p172
        %p414 = pneg %p203
        %p415 = pneg %p200
        %s416 = sand.u32 %s190, 1
        %s417 = scalar_lea.sflag [#allocation4], %s416
        %s418 = sand.u32 %s190, 1
        %s419 = smul.addr %s418, 4
        %s420 = scalar_lea.vmem [#allocation11], %s419
        %v421 = vld [vmem:[%s333] sm:$0xf]
        %v422 = vld [vmem:[%s343] sm:$0xf]
        %v423 = vld [vmem:[%s353] sm:$0xf]
        %v424 = vld [vmem:[%s363] sm:$0xf]
        %v425 = vld [vmem:[%s373] sm:$0xf]
        %v426 = vunpack.c.l.bf16 %v421
        %v427 = vmul.f32 %v426, -0.14585851
        %v428 = vunpack.c.l.bf16 %v422
        %v429 = vmul.f32 %v428, 0.14652936
        %v430 = vadd.f32 %v427, %v429
        %v431 = vunpack.c.l.bf16 %v423
        %v432 = vmul.f32 %v431, 0.39448163
        %v433 = vadd.f32 %v430, %v432
        %v434 = vunpack.c.l.bf16 %v424
        %v435 = vmul.f32 %v434, -0.18949555
        %v436 = vadd.f32 %v433, %v435
        %v437 = vunpack.c.l.bf16 %v425
        %v438 = vmul.f32 %v437, -0.5549266
        %v439 = vadd.f32 %v436, %v438
        %v440 = vadd.f32 %v439, 0.06383468
        %v441 = vsub.f32 0.0, %v440
        %v442 = vmul.f32 %v441, 1.442695
        %v443 = vpow.pop %v442
        %v444 = vadd.f32 %v443, 1.0
        %v445 = vrcp.pop %v444
        %v446 = vmul.f32 %v440, %v445
        %v447 = vpack.c.bf16 %v446, %v446
        %448 = vst [vmem:[%s420] sm:$0xf] %v447
        %s449 = sand.u32 %s190, 1
        %s450 = scalar_lea.sflag [#allocation4], %s449
        %s451 = sand.u32 %s190, 1
        %s452 = smul.addr %s451, 4
        %s453 = scalar_lea.vmem [#allocation11], %s452
        // Predicated region
        $region61: #{tpu_custom_call.1} parent=39 // pred_check
          %p454 = pneg %p200
        $region62: #{tpu_custom_call.1} parent=39 // pred_check_branch
          %456 = sbr.rel (%p454) target = $region64
        $region63: #{tpu_custom_call.1} parent=39 // pred_region
          %458 = vsyncadd %s450, 0
          %s459 = sadd.s32 %s33, %s32
          %s460 = smul.addr %s459, 4
          %s461 = scalar_lea.hbm %s5, %s460
          %s463 = sshll.u32 %s453, 4
          %s464 = int_to_ptr.vmem [resolvable:$true] %s463
          %s465 = sshll.u32 %s461, 4
          %s466 = int_to_ptr.hbm [resolvable:$true] %s465
          %468 = dma.vmem_to_hbm [thread:$0]  %s464, 64, %s466, %s450
        $region64: #{tpu_custom_call.1} parent=39 // pred_fallthru
          _
      $region40: #{tpu_custom_call.1} parent=5 // pred_fallthru
        _
      %p469 = scmp.le.s32.totalorder 2, %s23
      // Predicated region
      $region65: #{tpu_custom_call.1} parent=5 // pred_check
        %p470 = pneg %p469
      $region66: #{tpu_custom_call.1} parent=5 // pred_check_branch
        %472 = sbr.rel (%p470) target = $region68
      $region67: #{tpu_custom_call.1} parent=5 // pred_region
        %s473 = ssub.s32 %s23, 2
        // Predicated region
        $region69: #{tpu_custom_call.1} parent=67 // pred_check
          %p474 = pneg %p206
        $region70: #{tpu_custom_call.1} parent=67 // pred_check_branch
          %476 = sbr.rel (%p474) target = $region72
        $region71: #{tpu_custom_call.1} parent=67 // pred_region
          %s477 = sand.u32 %s191, 1
          %s478 = scalar_lea.sflag [#allocation4], %s477
          %s479 = sand.u32 %s191, 1
          %s480 = smul.addr %s479, 4
          %s481 = scalar_lea.vmem [#allocation11], %s480
          %483 = dma.done %s478, 64
        $region72: #{tpu_custom_call.1} parent=67 // pred_fallthru
          _
      $region68: #{tpu_custom_call.1} parent=5 // pred_fallthru
        _
    $region6: #{tpu_custom_call.1} parent=1 // loop_footer
      %s27 = sadd.s32 1, %s23
    $region7: #{tpu_custom_call.1} parent=1 // loop_footer_branch
      %22 = sbr.rel target = $region3
    $region8: #{tpu_custom_call.1} parent=1 // loop_exit
      _
    %484 = vsyncpa [#allocation3], 1
    %s485 = scalar_lea.sflag [#allocation3], 1
    %486 = vsyncpa %s485, 1
    %487 = vsyncpa [#allocation6], 1
    %s488 = scalar_lea.sflag [#allocation6], 1
    %489 = vsyncpa %s488, 1
    %490 = vsyncpa [#allocation9], 1
    %s491 = scalar_lea.sflag [#allocation9], 1
    %492 = vsyncpa %s491, 1
    %493 = vsyncpa [#allocation4], 1
    %s494 = scalar_lea.sflag [#allocation4], 1
    %495 = vsyncpa %s494, 1

</llo_original>
